<compile_context>
chip_gen: v5e
topology: v5e:2x2
jax: 0.10.0
libtpu: 0.0.40
codegen_flags: <defaults>
</compile_context>

<pallas_src>
import functools

import jax
import jax.numpy as jnp
from jax.experimental import pallas as pl
from jax.experimental.pallas import tpu as pltpu


def _distill_kl_kernel(ys_ref, yt_ref, out_ref, *, inv_T, tile_rows, batch):
    i = pl.program_id(0)

    # Upcast once, fold the 1/T pre-scale into a single constant multiply.
    ys = ys_ref[...].astype(jnp.float32) * inv_T
    yt = yt_ref[...].astype(jnp.float32) * inv_T

    # Row-stable shifts (class dim is the lane-major last axis).
    ys_sh = ys - jnp.max(ys, axis=-1, keepdims=True)
    yt_sh = yt - jnp.max(yt, axis=-1, keepdims=True)

    # Two full-tile exps total (student denom + teacher probs, reused).
    e_s = jnp.exp(ys_sh)
    e_t = jnp.exp(yt_sh)
    z_s = jnp.sum(e_s, axis=-1, keepdims=True)          # (TB, 1)
    z_t = jnp.sum(e_t, axis=-1, keepdims=True)          # (TB, 1)

    # p_t = softmax(yt/T) without recomputing exp(log_pt); reciprocal is on a
    # (TB, 1) slab -> effectively free on the EUP.
    p_t = e_t * pl.reciprocal(z_t, approx=True)

    # log p_t - log p_s = (yt_sh - ys_sh) - (log z_t - log z_s)
    log_ratio = (yt_sh - ys_sh) - (jnp.log(z_t) - jnp.log(z_s))

    row_kl = jnp.sum(p_t * log_ratio, axis=-1, keepdims=True)   # (TB, 1)

    # Zero out padded rows of the last (ragged) batch tile.
    row_idx = jax.lax.broadcasted_iota(jnp.int32, row_kl.shape, 0)
    valid = (i * tile_rows + row_idx) < batch
    row_kl = jnp.where(valid, row_kl, 0.0)

    out_ref[0, 0] = jnp.sum(row_kl)


def _choose_tile_rows(B, C, itemsize, max_tile_rows=None):
    # Keep 2 inputs x 2 pipeline buffers within a conservative VMEM budget
    # (safe for v5e/v6e/v7x scoped defaults; temporaries get the rest).
    budget_bytes = 8 * 1024 * 1024
    sub = 16 if itemsize <= 2 else 8
    tb = budget_bytes // (4 * C * itemsize)
    tb = max(sub, (tb // sub) * sub)
    tb = min(tb, 512)                               # diminishing returns past ~512 rows
    tb = min(tb, ((B + sub - 1) // sub) * sub)      # no bigger than sublane-rounded batch
    if max_tile_rows is not None:
        tb = min(tb, max(sub, (max_tile_rows // sub) * sub))
    return tb


def distill_kl(y_s: jax.Array, y_t: jax.Array, T: float,
               max_tile_rows: int | None = None) -> jax.Array:
    """Pallas TPU implementation of DistillKL.forward; returns a scalar."""
    assert y_s.shape == y_t.shape and y_s.ndim == 2
    B, C = y_s.shape
    itemsize = max(jnp.dtype(y_s.dtype).itemsize, jnp.dtype(y_t.dtype).itemsize)

    tb = _choose_tile_rows(B, C, itemsize, max_tile_rows)
    num_tiles = pl.cdiv(B, tb)

    kernel = functools.partial(
        _distill_kl_kernel, inv_T=1.0 / float(T), tile_rows=tb, batch=B)

    cost = pl.CostEstimate(
        flops=10 * B * C,
        transcendentals=2 * B * C,
        bytes_accessed=B * C * (jnp.dtype(y_s.dtype).itemsize
                                + jnp.dtype(y_t.dtype).itemsize) + 4 * num_tiles,
    )

    partials = pl.pallas_call(
        kernel,
        out_shape=jax.ShapeDtypeStruct((num_tiles, 1), jnp.float32),
        grid=(num_tiles,),
        in_specs=[
            pl.BlockSpec((tb, C), lambda i: (i, 0)),
            pl.BlockSpec((tb, C), lambda i: (i, 0)),
        ],
        out_specs=pl.BlockSpec((1, 1), lambda i: (i, 0),
                               memory_space=pltpu.SMEM),
        compiler_params=pltpu.CompilerParams(
            dimension_semantics=("parallel",),
            vmem_limit_bytes=32 * 1024 * 1024,
        ),
        cost_estimate=cost,
    )(y_s, y_t)

    # Single fused epilogue constant: T^2 / B.
    return jnp.sum(partials) * (float(T) * float(T) / float(B))


def _distill_kl_ref(y_s, y_t, T):
    log_ps = jax.nn.log_softmax(y_s.astype(jnp.float32) / T, axis=1)
    log_pt = jax.nn.log_softmax(y_t.astype(jnp.float32) / T, axis=1)
    p_t = jnp.exp(log_pt)
    return jnp.sum(p_t * (log_pt - log_ps)) * (T ** 2) / y_s.shape[0]


if __name__ == "__main__":
    T = 4.0
    key = jax.random.PRNGKey(0)

    # Small case matching the module spec: batch=8, classes=128.
    k_s, k_t, k_s2, k_t2 = jax.random.split(key, 4)
    y_s = jax.random.normal(k_s, (8, 128), dtype=jnp.float32)
    y_t = jax.random.normal(k_t, (8, 128), dtype=jnp.float32)
    loss = jax.block_until_ready(distill_kl(y_s, y_t, T))
    ref = jax.block_until_ready(_distill_kl_ref(y_s, y_t, T))
    assert jnp.allclose(loss, ref, rtol=2e-3, atol=1e-5), (loss, ref)

    # Ragged / multi-tile case: exercises the pipelined grid, per-tile partial
    # sums, and padded-row masking (B=200 not a multiple of the 64-row tile).
    y_s2 = jax.random.normal(k_s2, (200, 384), dtype=jnp.float32)
    y_t2 = jax.random.normal(k_t2, (200, 384), dtype=jnp.float32)
    loss2 = jax.block_until_ready(distill_kl(y_s2, y_t2, T, max_tile_rows=64))
    ref2 = jax.block_until_ready(_distill_kl_ref(y_s2, y_t2, T))
    assert jnp.allclose(loss2, ref2, rtol=2e-3, atol=1e-5), (loss2, ref2)

    print("KERNEL_OK")
</pallas_src>

<mosaic_0001>
module attributes {stable_mosaic.version = 11 : i64} {
  func.func @_distill_kl_kernel(%arg0: i32, %arg1: memref<8x128xf32, #tpu.memory_space<vmem>>, %arg2: memref<8x128xf32, #tpu.memory_space<vmem>>, %arg3: memref<1x1xf32, #tpu.memory_space<smem>>) attributes {dimension_semantics = [#tpu.dimension_semantics<parallel>], iteration_bounds = array<i64: 1>, scalar_prefetch = 0 : i64, scratch_operands = 0 : i64, tpu.core_type = #tpu.core_type<tc>, window_params = [{transform_indices = @transform_0, window_bounds = array<i64: 8, 128>}, {transform_indices = @transform_1, window_bounds = array<i64: 8, 128>}, {transform_indices = @transform_2, window_bounds = array<i64: 1, 1>}]} {
    %c0 = arith.constant 0 : index
    %c0_0 = arith.constant 0 : index
    %0 = vector.load %arg1[%c0, %c0_0] : memref<8x128xf32, #tpu.memory_space<vmem>>, vector<8x128xf32>
    %cst = arith.constant 2.500000e-01 : f32
    %1 = vector.broadcast %cst : f32 to vector<8x128xf32>
    %2 = arith.mulf %0, %1 : vector<8x128xf32>
    %c0_1 = arith.constant 0 : index
    %c0_2 = arith.constant 0 : index
    %3 = vector.load %arg2[%c0_1, %c0_2] : memref<8x128xf32, #tpu.memory_space<vmem>>, vector<8x128xf32>
    %cst_3 = arith.constant 2.500000e-01 : f32
    %4 = vector.broadcast %cst_3 : f32 to vector<8x128xf32>
    %5 = arith.mulf %3, %4 : vector<8x128xf32>
    %cst_4 = arith.constant dense<0xFF800000> : vector<8xf32>
    %6 = vector.multi_reduction <maximumf>, %2, %cst_4 [1] : vector<8x128xf32> to vector<8xf32>
    %7 = vector.shape_cast %6 : vector<8xf32> to vector<8x1xf32>
    %8 = vector.broadcast %7 : vector<8x1xf32> to vector<8x128xf32>
    %9 = arith.subf %2, %8 : vector<8x128xf32>
    %cst_5 = arith.constant dense<0xFF800000> : vector<8xf32>
    %10 = vector.multi_reduction <maximumf>, %5, %cst_5 [1] : vector<8x128xf32> to vector<8xf32>
    %11 = vector.shape_cast %10 : vector<8xf32> to vector<8x1xf32>
    %12 = vector.broadcast %11 : vector<8x1xf32> to vector<8x128xf32>
    %13 = arith.subf %5, %12 : vector<8x128xf32>
    %14 = math.exp %9 : vector<8x128xf32>
    %15 = math.exp %13 : vector<8x128xf32>
    %cst_6 = arith.constant dense<0.000000e+00> : vector<8xf32>
    %16 = vector.multi_reduction <add>, %14, %cst_6 [1] : vector<8x128xf32> to vector<8xf32>
    %17 = vector.shape_cast %16 : vector<8xf32> to vector<8x1xf32>
    %cst_7 = arith.constant dense<0.000000e+00> : vector<8xf32>
    %18 = vector.multi_reduction <add>, %15, %cst_7 [1] : vector<8x128xf32> to vector<8xf32>
    %19 = vector.shape_cast %18 : vector<8xf32> to vector<8x1xf32>
    %20 = tpu.reciprocal %19 {approx = true} : vector<8x1xf32> -> vector<8x1xf32>
    %21 = vector.broadcast %20 : vector<8x1xf32> to vector<8x128xf32>
    %22 = arith.mulf %15, %21 : vector<8x128xf32>
    %23 = arith.subf %13, %9 : vector<8x128xf32>
    %24 = math.log %19 : vector<8x1xf32>
    %25 = math.log %17 : vector<8x1xf32>
    %26 = arith.subf %24, %25 : vector<8x1xf32>
    %27 = vector.broadcast %26 : vector<8x1xf32> to vector<8x128xf32>
    %28 = arith.subf %23, %27 : vector<8x128xf32>
    %29 = arith.mulf %22, %28 : vector<8x128xf32>
    %cst_8 = arith.constant dense<0.000000e+00> : vector<8xf32>
    %30 = vector.multi_reduction <add>, %29, %cst_8 [1] : vector<8x128xf32> to vector<8xf32>
    %31 = vector.shape_cast %30 : vector<8xf32> to vector<8x1xf32>
    %32 = tpu.iota {dimensions = array<i32: 0>} : vector<8x1xi32>
    %c8_i32 = arith.constant 8 : i32
    %33 = arith.muli %arg0, %c8_i32 : i32
    %34 = vector.broadcast %33 : i32 to vector<8x1xi32>
    %35 = arith.addi %34, %32 : vector<8x1xi32>
    %c8_i32_9 = arith.constant 8 : i32
    %36 = vector.broadcast %c8_i32_9 : i32 to vector<8x1xi32>
    %37 = arith.cmpi slt, %35, %36 : vector<8x1xi32>
    %cst_10 = arith.constant 0.000000e+00 : f32
    %38 = vector.broadcast %cst_10 : f32 to vector<8x1xf32>
    %39 = arith.select %37, %31, %38 : vector<8x1xi1>, vector<8x1xf32>
    %40 = vector.shape_cast %39 : vector<8x1xf32> to vector<1x8x1xf32>
    %cst_11 = arith.constant dense<0.000000e+00> : vector<1xf32>
    %41 = vector.multi_reduction <add>, %40, %cst_11 [1, 2] : vector<1x8x1xf32> to vector<1xf32>
    %42 = vector.shape_cast %41 : vector<1xf32> to vector<1x1x1xf32>
    %43 = vector.extract %42[0, 0, 0] : f32 from vector<1x1x1xf32>
    %c0_12 = arith.constant 0 : index
    %c0_13 = arith.constant 0 : index
    %44 = memref.load %arg3[%c0_12, %c0_13] : memref<1x1xf32, #tpu.memory_space<smem>>
    memref.store %43, %arg3[%c0_12, %c0_13] : memref<1x1xf32, #tpu.memory_space<smem>>
    return
  }
  func.func @transform_0(%arg0: i32) -> (i32, i32) {
    %c0_i32 = arith.constant 0 : i32
    %c0_i32_0 = arith.constant 0 : i32
    return %arg0, %c0_i32 : i32, i32
  }
  func.func @transform_1(%arg0: i32) -> (i32, i32) {
    %c0_i32 = arith.constant 0 : i32
    %c0_i32_0 = arith.constant 0 : i32
    return %arg0, %c0_i32 : i32, i32
  }
  func.func @transform_2(%arg0: i32) -> (i32, i32) {
    %c0_i32 = arith.constant 0 : i32
    %c0_i32_0 = arith.constant 0 : i32
    return %arg0, %c0_i32 : i32, i32
  }
}

</mosaic_0001>

<llo_original>
// kernel: tpu_custom_call.1
$region0: #{tpu_custom_call.1}
  #allocation0 [shape = 'u32[]', space=smem, size = 0x4, offset = 0x4, fixed_abs, tag = 'smem constant byte address 0x4 - core index']
  #allocation1 [shape = 'u32[72,128]{1,0:T(1,128)}', space=vmem, size = 0x9000, scoped, tag = 'internal scratch']
  %s0 = inlined_call_operand.hbm [shape: f32[8,128], index: 0, kind: input, shape index: {}]
  %s1 = inlined_call_operand.hbm [shape: f32[8,128], index: 1, kind: input, shape index: {}]
  %s2 = inlined_call_operand.hbm [shape: f32[1,1], index: 2, kind: output, shape index: {}]
  %s3 = sld [smem:[#allocation0]]
  $region26: #{tpu_custom_call.1} parent=0
    _
  %s5 = ssub.s32 1, %s3
  %s6 = scalar_select 0, %s5, %s3
  $region1: #{tpu_custom_call.1} parent=0
    #allocation2 [shape = 'u8[4096]{0}', space=vmem, size = 0x1000, scoped, tag = 'input window, operand 0, single buffered']
    #allocation3 [shape = 's32[1]{0}', space=sflag, size = 0x4, scoped, tag = 'scoped memory for tpu_custom_call.1']
    #allocation4 [shape = 's32[1]{0}', space=sflag, size = 0x4, scoped, tag = 'scoped memory for tpu_custom_call.1']
    #allocation5 [shape = 'u8[4096]{0}', space=vmem, size = 0x1000, scoped, tag = 'input window, operand 1, single buffered']
    #allocation6 [shape = 's32[1]{0}', space=sflag, size = 0x4, scoped, tag = 'scoped memory for tpu_custom_call.1']
    #allocation7 [shape = 'u8[512]{0}', space=smem, size = 0x200, scoped, tag = 'output window, operand 0, single buffered']
    %7 = vsyncpa [#allocation3], 0
    %8 = vsyncpa [#allocation6], 0
    %9 = vsyncpa [#allocation4], 0
    // Predicated region
    $region2: #{tpu_custom_call.1} parent=1 // pred_check
      _
    $region3: #{tpu_custom_call.1} parent=1 // pred_check_branch
      %11 = sbr.rel (0) target = $region5
    $region4: #{tpu_custom_call.1} parent=1 // pred_region
      %13 = vsyncadd [#allocation3], 0
      %s15 = sshll.u32 %s0, 4
      %s16 = int_to_ptr.hbm [resolvable:$true] %s15
      %s17 = sshll.u32 [#allocation2], 4
      %s18 = int_to_ptr.vmem [resolvable:$true] %s17
      %20 = dma.hbm_to_vmem [thread:$0]  %s16, 128, %s18, [#allocation3]
    $region5: #{tpu_custom_call.1} parent=1 // pred_fallthru
      _
    // Predicated region
    $region6: #{tpu_custom_call.1} parent=1 // pred_check
      _
    $region7: #{tpu_custom_call.1} parent=1 // pred_check_branch
      %22 = sbr.rel (0) target = $region9
    $region8: #{tpu_custom_call.1} parent=1 // pred_region
      %24 = vsyncadd [#allocation6], 0
      %s26 = sshll.u32 %s1, 4
      %s27 = int_to_ptr.hbm [resolvable:$true] %s26
      %s28 = sshll.u32 [#allocation5], 4
      %s29 = int_to_ptr.vmem [resolvable:$true] %s28
      %31 = dma.hbm_to_vmem [thread:$0]  %s27, 128, %s29, [#allocation6]
    $region9: #{tpu_custom_call.1} parent=1 // pred_fallthru
      _
    // Predicated region
    $region10: #{tpu_custom_call.1} parent=1 // pred_check
      _
    $region11: #{tpu_custom_call.1} parent=1 // pred_check_branch
      %33 = sbr.rel (0) target = $region13
    $region12: #{tpu_custom_call.1} parent=1 // pred_region
      %35 = dma.done [#allocation3], 128
    $region13: #{tpu_custom_call.1} parent=1 // pred_fallthru
      _
    // Predicated region
    $region14: #{tpu_custom_call.1} parent=1 // pred_check
      _
    $region15: #{tpu_custom_call.1} parent=1 // pred_check_branch
      %37 = sbr.rel (0) target = $region17
    $region16: #{tpu_custom_call.1} parent=1 // pred_region
      %39 = dma.done [#allocation6], 128
    $region17: #{tpu_custom_call.1} parent=1 // pred_fallthru
      _
    %v40 = vld [vmem:[#allocation2] sm:$0xff]
    %v41 = vmul.f32 %v40, 0.25
    %v42 = vld [vmem:[#allocation5] sm:$0xff]
    %v43 = vmul.f32 %v42, 0.25
    %44 = vmax.xlane.f32.xlu0 %v41
    %v45 = vpop.xlane.xlu0 %44
    %v46 = vsub.f32 %v41, %v45
    %47 = vmax.xlane.f32.xlu0 %v43
    %v48 = vpop.xlane.xlu0 %47
    %v49 = vsub.f32 %v43, %v48
    %v50 = vmul.f32 %v46, 1.442695
    %v51 = vpow.pop %v50
    %v52 = vmul.f32 %v49, 1.442695
    %v53 = vpow.pop %v52
    %54 = vadd.xlane.f32.xlu0 %v51
    %v55 = vpop.xlane.xlu0 %54
    %56 = vadd.xlane.f32.xlu0 %v53
    %v57 = vpop.xlane.xlu0 %56
    %v58 = vrcp.pop %v57
    %v59 = vmul.f32 %v53, %v58
    %v60 = vsub.f32 %v49, %v46
    %v61 = vlog2.pop %v57
    %v62 = vmul.f32 %v61, 0.6931472
    %v63 = vlog2.pop %v55
    %v64 = vmul.f32 %v63, 0.6931472
    %v65 = vsub.f32 %v62, %v64
    %v66 = vsub.f32 %v60, %v65
    %v67 = vmul.f32 %v59, %v66
    %68 = vadd.xlane.f32.xlu0 %v67
    %v69 = vpop.xlane.xlu0 %68
    %v70 = vlaneseq
    %v71 = vshrl.u32 %v70, 7
    %s72 = smul.u32 0, 8
    %v73 = vstv %s72
    %v74 = vadd.s32 %v73, %v71
    %vm75 = vcmp.lt.s32.totalorder %v74, 8
    %v76 = vsel %vm75, %v69, 0.0
    %vm77 = vcmask 7168
    %v78 = vsel %vm77, %v76, 0.0
    %79 = vadd.xlane.f32.xlu0 %v78
    %v80 = vpop.xlane.xlu0 %79
    %v81 = vrot.slane %v80, 4
    %v82 = vadd.f32 %v80, %v81
    %v83 = vrot.slane %v82, 2
    %v84 = vadd.f32 %v82, %v83
    %v85 = vrot.slane %v84, 1
    %v86 = vadd.f32 %v84, %v85
    %s87 = vtos %v86
    %s88 = scalar_lea.smem [#allocation7], 0
    %89 = sst [smem:[%s88]] %s87
    // Predicated region
    $region18: #{tpu_custom_call.1} parent=1 // pred_check
      _
    $region19: #{tpu_custom_call.1} parent=1 // pred_check_branch
      %91 = sbr.rel (0) target = $region21
    $region20: #{tpu_custom_call.1} parent=1 // pred_region
      %93 = vsyncadd [#allocation4], 0
      %s95 = sshll.u32 %s2, 4
      %s96 = int_to_ptr.hbm [resolvable:$true] %s95
      %98 = dma.smem_to_hbm [#allocation7], 16, %s96, [#allocation4]
    $region21: #{tpu_custom_call.1} parent=1 // pred_fallthru
      _
    // Predicated region
    $region22: #{tpu_custom_call.1} parent=1 // pred_check
      _
    $region23: #{tpu_custom_call.1} parent=1 // pred_check_branch
      %100 = sbr.rel (0) target = $region25
    $region24: #{tpu_custom_call.1} parent=1 // pred_region
      %102 = dma.done [#allocation4], 16
    $region25: #{tpu_custom_call.1} parent=1 // pred_fallthru
      _
    %103 = sfence
    %104 = vsyncpa [#allocation3], 1
    %105 = vsyncpa [#allocation6], 1
    %106 = vsyncpa [#allocation4], 1

</llo_original>
